<compile_context>
chip_gen: v7x
topology: tpu7x:2x2x1
jax: 0.10.0
libtpu: 0.0.40
codegen_flags: <defaults>
</compile_context>

<pallas_src>
import math
from functools import partial

import jax
import jax.numpy as jnp
import numpy as np
from jax.experimental import pallas as pl
from jax.experimental.pallas import tpu as pltpu

LANE = 128        # lane width; row count is padded to a multiple of this
MAX_TILE = 2048   # rows (on the lane axis) processed per grid step


def _round_up(x, m):
    return ((x + m - 1) // m) * m


def _mlp_kernel(x_ref, wt_ref, o_ref, *, sizes, feat):
    """x_ref: (dim_in, tile)   -- rows on the lane axis
       wt_ref: (n_layers, feat, feat), wt[l, j, i] = W_l[i, j] (W stored (in, out))
       o_ref: (nbasis, tile)

    Each layer l: y[j, n] = sum_i W_l[i, j] * h[i, n], realized as in_w
    rank-1 VPU broadcast-FMAs over the lane-dense (feat, tile) block.
    tanh on every layer except the last."""
    tile = x_ref.shape[-1]
    n_layers = len(sizes) - 1

    src = x_ref[...]                                   # (dim_in, tile)
    for l in range(n_layers):
        in_w = sizes[l]
        wt_l = wt_ref[l]                               # (feat, feat)
        # i = 0 term initializes the accumulator.
        acc = wt_l[:, 0:1] * jnp.broadcast_to(src[0:1, :], (feat, tile))
        for i in range(1, in_w):
            acc = acc + wt_l[:, i:i + 1] * jnp.broadcast_to(
                src[i:i + 1, :], (feat, tile))
        src = jnp.tanh(acc) if l < n_layers - 1 else acc
    o_ref[...] = src[:o_ref.shape[0], :]


def init_neural_basis_params(key, dim_in=1, hidden=(4, 4, 4), nbasis=4):
    """Matches nn.Linear(bias=False) default init:
    W ~ U(-1/sqrt(fan_in), 1/sqrt(fan_in)), stored as (in, out)."""
    sizes = [dim_in, *hidden, nbasis]
    weights = []
    for i in range(len(sizes) - 1):
        key, sub = jax.random.split(key)
        fan_in, fan_out = sizes[i], sizes[i + 1]
        bound = 1.0 / math.sqrt(fan_in)
        w = jax.random.uniform(sub, (fan_in, fan_out), jnp.float32,
                               minval=-bound, maxval=bound)
        weights.append(w)
    return weights


def prepare_weights(weights, sizes):
    """Build the padded, transposed weight stack ONCE (outside the forward):
    wt[l, j, i] = W_l[i, j], zero-padded to (n_layers, feat, feat), feat = 8
    for the default widths."""
    n_layers = len(weights)
    feat = _round_up(max(sizes), 8)
    wt = np.zeros((n_layers, feat, feat), np.float32)
    for l, w in enumerate(weights):
        w_np = np.asarray(w, np.float32)
        wt[l, :w_np.shape[1], :w_np.shape[0]] = w_np.T
    return jnp.asarray(wt)


def neural_basis_forward(t, wt_stack, sizes):
    """t: (..., dim_in) float32.  wt_stack from prepare_weights.
    Returns (..., nbasis) float32."""
    sizes = tuple(int(s) for s in sizes)
    t = jnp.asarray(t, jnp.float32)
    lead_shape = t.shape[:-1]
    dim_in = t.shape[-1]
    assert dim_in == sizes[0]
    nbasis = sizes[-1]
    n_layers = len(sizes) - 1
    feat = wt_stack.shape[-1]

    # --- glue: rows -> lane axis, pad row count only -----------------------
    n_rows = int(np.prod(lead_shape)) if lead_shape else 1
    x = t.reshape(n_rows, dim_in).T                    # (dim_in, n_rows)
    tile = min(MAX_TILE, _round_up(max(n_rows, 1), LANE))
    n_pad = _round_up(n_rows, tile)
    x = jnp.pad(x, ((0, 0), (0, n_pad - n_rows)))      # (dim_in, n_pad)

    # --- Pallas hot path ----------------------------------------------------
    grid = (n_pad // tile,)
    out_t = pl.pallas_call(
        partial(_mlp_kernel, sizes=sizes, feat=feat),
        out_shape=jax.ShapeDtypeStruct((nbasis, n_pad), jnp.float32),
        grid_spec=pltpu.PrefetchScalarGridSpec(
            num_scalar_prefetch=0,
            grid=grid,
            in_specs=[
                pl.BlockSpec((dim_in, tile), lambda i: (0, i)),
                pl.BlockSpec((n_layers, feat, feat), lambda i: (0, 0, 0)),
            ],
            out_specs=pl.BlockSpec((nbasis, tile), lambda i: (0, i)),
        ),
        compiler_params=pltpu.CompilerParams(
            dimension_semantics=("parallel",)),
    )(x, wt_stack)

    # --- glue: strip row padding, restore (..., nbasis) ---------------------
    out = out_t[:, :n_rows].T                          # (n_rows, nbasis)
    return out.reshape(*lead_shape, nbasis)


def _reference_forward(t, weights):
    h = jnp.asarray(t, jnp.float32)
    for w in weights[:-1]:
        h = jnp.tanh(h @ w)
    return h @ weights[-1]


if __name__ == "__main__":
    key = jax.random.PRNGKey(0)
    k_param, k_input = jax.random.split(key)

    dim_in, hidden, nbasis = 1, (4, 4, 4), 4
    sizes = (dim_in, *hidden, nbasis)
    B, S = 2, 8

    weights = init_neural_basis_params(k_param, dim_in, hidden, nbasis)
    wt_stack = prepare_weights(weights, sizes)          # built once, reused
    t = jax.random.normal(k_input, (B, S, dim_in), jnp.float32)

    out = neural_basis_forward(t, wt_stack, sizes)
    out = jax.block_until_ready(out)

    ref = _reference_forward(t, weights)
    assert out.shape == (B, S, nbasis), out.shape
    np.testing.assert_allclose(np.asarray(out), np.asarray(ref),
                               rtol=1e-5, atol=1e-5)
    print("KERNEL_OK")
</pallas_src>

<mosaic_0001>
module attributes {stable_mosaic.version = 11 : i64} {
  func.func @_mlp_kernel(%arg0: i32, %arg1: memref<1x128xf32, #tpu.memory_space<vmem>>, %arg2: memref<4x8x8xf32, #tpu.memory_space<vmem>>, %arg3: memref<4x128xf32, #tpu.memory_space<vmem>>) attributes {dimension_semantics = [#tpu.dimension_semantics<parallel>], iteration_bounds = array<i64: 1>, scalar_prefetch = 0 : i64, scratch_operands = 0 : i64, tpu.core_type = #tpu.core_type<tc>, window_params = [{transform_indices = @transform_0, window_bounds = array<i64: 1, 128>}, {pipeline_mode = #tpu.pipeline_mode<synchronous>, transform_indices = @transform_1, window_bounds = array<i64: 4, 8, 8>}, {transform_indices = @transform_2, window_bounds = array<i64: 4, 128>}]} {
    %c0 = arith.constant 0 : index
    %c0_0 = arith.constant 0 : index
    %0 = vector.load %arg1[%c0, %c0_0] : memref<1x128xf32, #tpu.memory_space<vmem>>, vector<1x128xf32>
    %c0_1 = arith.constant 0 : index
    %c0_2 = arith.constant 0 : index
    %c0_3 = arith.constant 0 : index
    %1 = vector.load %arg2[%c0_1, %c0_2, %c0_3] : memref<4x8x8xf32, #tpu.memory_space<vmem>>, vector<1x8x8xf32>
    %2 = vector.shape_cast %1 : vector<1x8x8xf32> to vector<8x8xf32>
    %3 = vector.extract_strided_slice %2 {offsets = [0, 0], sizes = [8, 1], strides = [1, 1]} : vector<8x8xf32> to vector<8x1xf32>
    %4 = vector.shape_cast %0 : vector<1x128xf32> to vector<1x128xf32>
    %5 = vector.broadcast %4 : vector<1x128xf32> to vector<8x128xf32>
    %6 = vector.broadcast %3 : vector<8x1xf32> to vector<8x128xf32>
    %7 = arith.mulf %6, %5 : vector<8x128xf32>
    %8 = math.tanh %7 : vector<8x128xf32>
    %c1 = arith.constant 1 : index
    %c0_4 = arith.constant 0 : index
    %c0_5 = arith.constant 0 : index
    %9 = vector.load %arg2[%c1, %c0_4, %c0_5] : memref<4x8x8xf32, #tpu.memory_space<vmem>>, vector<1x8x8xf32>
    %10 = vector.shape_cast %9 : vector<1x8x8xf32> to vector<8x8xf32>
    %11 = vector.extract_strided_slice %10 {offsets = [0, 0], sizes = [8, 1], strides = [1, 1]} : vector<8x8xf32> to vector<8x1xf32>
    %12 = vector.extract_strided_slice %8 {offsets = [0, 0], sizes = [1, 128], strides = [1, 1]} : vector<8x128xf32> to vector<1x128xf32>
    %13 = vector.shape_cast %12 : vector<1x128xf32> to vector<1x128xf32>
    %14 = vector.broadcast %13 : vector<1x128xf32> to vector<8x128xf32>
    %15 = vector.broadcast %11 : vector<8x1xf32> to vector<8x128xf32>
    %16 = arith.mulf %15, %14 : vector<8x128xf32>
    %17 = vector.extract_strided_slice %10 {offsets = [0, 1], sizes = [8, 1], strides = [1, 1]} : vector<8x8xf32> to vector<8x1xf32>
    %18 = vector.extract_strided_slice %8 {offsets = [1, 0], sizes = [1, 128], strides = [1, 1]} : vector<8x128xf32> to vector<1x128xf32>
    %19 = vector.shape_cast %18 : vector<1x128xf32> to vector<1x128xf32>
    %20 = vector.broadcast %19 : vector<1x128xf32> to vector<8x128xf32>
    %21 = vector.broadcast %17 : vector<8x1xf32> to vector<8x128xf32>
    %22 = arith.mulf %21, %20 : vector<8x128xf32>
    %23 = arith.addf %16, %22 : vector<8x128xf32>
    %24 = vector.extract_strided_slice %10 {offsets = [0, 2], sizes = [8, 1], strides = [1, 1]} : vector<8x8xf32> to vector<8x1xf32>
    %25 = vector.extract_strided_slice %8 {offsets = [2, 0], sizes = [1, 128], strides = [1, 1]} : vector<8x128xf32> to vector<1x128xf32>
    %26 = vector.shape_cast %25 : vector<1x128xf32> to vector<1x128xf32>
    %27 = vector.broadcast %26 : vector<1x128xf32> to vector<8x128xf32>
    %28 = vector.broadcast %24 : vector<8x1xf32> to vector<8x128xf32>
    %29 = arith.mulf %28, %27 : vector<8x128xf32>
    %30 = arith.addf %23, %29 : vector<8x128xf32>
    %31 = vector.extract_strided_slice %10 {offsets = [0, 3], sizes = [8, 1], strides = [1, 1]} : vector<8x8xf32> to vector<8x1xf32>
    %32 = vector.extract_strided_slice %8 {offsets = [3, 0], sizes = [1, 128], strides = [1, 1]} : vector<8x128xf32> to vector<1x128xf32>
    %33 = vector.shape_cast %32 : vector<1x128xf32> to vector<1x128xf32>
    %34 = vector.broadcast %33 : vector<1x128xf32> to vector<8x128xf32>
    %35 = vector.broadcast %31 : vector<8x1xf32> to vector<8x128xf32>
    %36 = arith.mulf %35, %34 : vector<8x128xf32>
    %37 = arith.addf %30, %36 : vector<8x128xf32>
    %38 = math.tanh %37 : vector<8x128xf32>
    %c2 = arith.constant 2 : index
    %c0_6 = arith.constant 0 : index
    %c0_7 = arith.constant 0 : index
    %39 = vector.load %arg2[%c2, %c0_6, %c0_7] : memref<4x8x8xf32, #tpu.memory_space<vmem>>, vector<1x8x8xf32>
    %40 = vector.shape_cast %39 : vector<1x8x8xf32> to vector<8x8xf32>
    %41 = vector.extract_strided_slice %40 {offsets = [0, 0], sizes = [8, 1], strides = [1, 1]} : vector<8x8xf32> to vector<8x1xf32>
    %42 = vector.extract_strided_slice %38 {offsets = [0, 0], sizes = [1, 128], strides = [1, 1]} : vector<8x128xf32> to vector<1x128xf32>
    %43 = vector.shape_cast %42 : vector<1x128xf32> to vector<1x128xf32>
    %44 = vector.broadcast %43 : vector<1x128xf32> to vector<8x128xf32>
    %45 = vector.broadcast %41 : vector<8x1xf32> to vector<8x128xf32>
    %46 = arith.mulf %45, %44 : vector<8x128xf32>
    %47 = vector.extract_strided_slice %40 {offsets = [0, 1], sizes = [8, 1], strides = [1, 1]} : vector<8x8xf32> to vector<8x1xf32>
    %48 = vector.extract_strided_slice %38 {offsets = [1, 0], sizes = [1, 128], strides = [1, 1]} : vector<8x128xf32> to vector<1x128xf32>
    %49 = vector.shape_cast %48 : vector<1x128xf32> to vector<1x128xf32>
    %50 = vector.broadcast %49 : vector<1x128xf32> to vector<8x128xf32>
    %51 = vector.broadcast %47 : vector<8x1xf32> to vector<8x128xf32>
    %52 = arith.mulf %51, %50 : vector<8x128xf32>
    %53 = arith.addf %46, %52 : vector<8x128xf32>
    %54 = vector.extract_strided_slice %40 {offsets = [0, 2], sizes = [8, 1], strides = [1, 1]} : vector<8x8xf32> to vector<8x1xf32>
    %55 = vector.extract_strided_slice %38 {offsets = [2, 0], sizes = [1, 128], strides = [1, 1]} : vector<8x128xf32> to vector<1x128xf32>
    %56 = vector.shape_cast %55 : vector<1x128xf32> to vector<1x128xf32>
    %57 = vector.broadcast %56 : vector<1x128xf32> to vector<8x128xf32>
    %58 = vector.broadcast %54 : vector<8x1xf32> to vector<8x128xf32>
    %59 = arith.mulf %58, %57 : vector<8x128xf32>
    %60 = arith.addf %53, %59 : vector<8x128xf32>
    %61 = vector.extract_strided_slice %40 {offsets = [0, 3], sizes = [8, 1], strides = [1, 1]} : vector<8x8xf32> to vector<8x1xf32>
    %62 = vector.extract_strided_slice %38 {offsets = [3, 0], sizes = [1, 128], strides = [1, 1]} : vector<8x128xf32> to vector<1x128xf32>
    %63 = vector.shape_cast %62 : vector<1x128xf32> to vector<1x128xf32>
    %64 = vector.broadcast %63 : vector<1x128xf32> to vector<8x128xf32>
    %65 = vector.broadcast %61 : vector<8x1xf32> to vector<8x128xf32>
    %66 = arith.mulf %65, %64 : vector<8x128xf32>
    %67 = arith.addf %60, %66 : vector<8x128xf32>
    %68 = math.tanh %67 : vector<8x128xf32>
    %c3 = arith.constant 3 : index
    %c0_8 = arith.constant 0 : index
    %c0_9 = arith.constant 0 : index
    %69 = vector.load %arg2[%c3, %c0_8, %c0_9] : memref<4x8x8xf32, #tpu.memory_space<vmem>>, vector<1x8x8xf32>
    %70 = vector.shape_cast %69 : vector<1x8x8xf32> to vector<8x8xf32>
    %71 = vector.extract_strided_slice %70 {offsets = [0, 0], sizes = [8, 1], strides = [1, 1]} : vector<8x8xf32> to vector<8x1xf32>
    %72 = vector.extract_strided_slice %68 {offsets = [0, 0], sizes = [1, 128], strides = [1, 1]} : vector<8x128xf32> to vector<1x128xf32>
    %73 = vector.shape_cast %72 : vector<1x128xf32> to vector<1x128xf32>
    %74 = vector.broadcast %73 : vector<1x128xf32> to vector<8x128xf32>
    %75 = vector.broadcast %71 : vector<8x1xf32> to vector<8x128xf32>
    %76 = arith.mulf %75, %74 : vector<8x128xf32>
    %77 = vector.extract_strided_slice %70 {offsets = [0, 1], sizes = [8, 1], strides = [1, 1]} : vector<8x8xf32> to vector<8x1xf32>
    %78 = vector.extract_strided_slice %68 {offsets = [1, 0], sizes = [1, 128], strides = [1, 1]} : vector<8x128xf32> to vector<1x128xf32>
    %79 = vector.shape_cast %78 : vector<1x128xf32> to vector<1x128xf32>
    %80 = vector.broadcast %79 : vector<1x128xf32> to vector<8x128xf32>
    %81 = vector.broadcast %77 : vector<8x1xf32> to vector<8x128xf32>
    %82 = arith.mulf %81, %80 : vector<8x128xf32>
    %83 = arith.addf %76, %82 : vector<8x128xf32>
    %84 = vector.extract_strided_slice %70 {offsets = [0, 2], sizes = [8, 1], strides = [1, 1]} : vector<8x8xf32> to vector<8x1xf32>
    %85 = vector.extract_strided_slice %68 {offsets = [2, 0], sizes = [1, 128], strides = [1, 1]} : vector<8x128xf32> to vector<1x128xf32>
    %86 = vector.shape_cast %85 : vector<1x128xf32> to vector<1x128xf32>
    %87 = vector.broadcast %86 : vector<1x128xf32> to vector<8x128xf32>
    %88 = vector.broadcast %84 : vector<8x1xf32> to vector<8x128xf32>
    %89 = arith.mulf %88, %87 : vector<8x128xf32>
    %90 = arith.addf %83, %89 : vector<8x128xf32>
    %91 = vector.extract_strided_slice %70 {offsets = [0, 3], sizes = [8, 1], strides = [1, 1]} : vector<8x8xf32> to vector<8x1xf32>
    %92 = vector.extract_strided_slice %68 {offsets = [3, 0], sizes = [1, 128], strides = [1, 1]} : vector<8x128xf32> to vector<1x128xf32>
    %93 = vector.shape_cast %92 : vector<1x128xf32> to vector<1x128xf32>
    %94 = vector.broadcast %93 : vector<1x128xf32> to vector<8x128xf32>
    %95 = vector.broadcast %91 : vector<8x1xf32> to vector<8x128xf32>
    %96 = arith.mulf %95, %94 : vector<8x128xf32>
    %97 = arith.addf %90, %96 : vector<8x128xf32>
    %98 = vector.extract_strided_slice %97 {offsets = [0, 0], sizes = [4, 128], strides = [1, 1]} : vector<8x128xf32> to vector<4x128xf32>
    %c0_10 = arith.constant 0 : index
    %c0_11 = arith.constant 0 : index
    %99 = vector.load %arg3[%c0_10, %c0_11] : memref<4x128xf32, #tpu.memory_space<vmem>>, vector<4x128xf32>
    tpu.vector_store %arg3[%c0_10, %c0_11], %98 {strides = array<i32>} : memref<4x128xf32, #tpu.memory_space<vmem>>, vector<4x128xf32>,
    return
  }
  func.func @transform_0(%arg0: i32) -> (i32, i32) {
    %c0_i32 = arith.constant 0 : i32
    %c0_i32_0 = arith.constant 0 : i32
    return %c0_i32, %arg0 : i32, i32
  }
  func.func @transform_1(%arg0: i32) -> (i32, i32, i32) {
    %c0_i32 = arith.constant 0 : i32
    %c0_i32_0 = arith.constant 0 : i32
    %c0_i32_1 = arith.constant 0 : i32
    %c0_i32_2 = arith.constant 0 : i32
    return %c0_i32, %c0_i32_0, %c0_i32_1 : i32, i32, i32
  }
  func.func @transform_2(%arg0: i32) -> (i32, i32) {
    %c0_i32 = arith.constant 0 : i32
    %c0_i32_0 = arith.constant 0 : i32
    return %c0_i32, %arg0 : i32, i32
  }
}

</mosaic_0001>

<llo_original>
// kernel: tpu_custom_call.1
$region0: #{tpu_custom_call.1}
  #allocation0 [shape = 'u32[]', space=smem, size = 0x4, offset = 0x4, fixed_abs, tag = 'smem constant byte address 0x4 - core index']
  #allocation1 [shape = 'u32[144,128]{1,0:T(1,128)}', space=vmem, size = 0x12000, scoped, tag = 'internal scratch']
  %s0 = inlined_call_operand.hbm [shape: f32[1,128], index: 0, kind: input, shape index: {}]
  %s1 = inlined_call_operand.hbm [shape: f32[4,8,8], index: 1, kind: input, shape index: {}]
  %s2 = inlined_call_operand.hbm [shape: f32[4,128], index: 2, kind: output, shape index: {}]
  %s3 = sld [smem:[#allocation0]]
  $region26: #{tpu_custom_call.1} parent=0
    _
  %s5 = ssub.s32 1, %s3
  %s6 = scalar_select 0, %s5, %s3
  $region1: #{tpu_custom_call.1} parent=0
    #allocation2 [shape = 'u8[512]{0}', space=vmem, size = 0x400, scoped, tag = 'input window, operand 0, single buffered']
    #allocation3 [shape = 's32[1]{0}', space=sflag, size = 0x4, scoped, tag = 'scoped memory for tpu_custom_call.1']
    #allocation4 [shape = 's32[1]{0}', space=sflag, size = 0x4, scoped, tag = 'scoped memory for tpu_custom_call.1']
    #allocation5 [shape = 'u8[16384]{0}', space=vmem, size = 0x4000, scoped, tag = 'input window, operand 1, single buffered']
    #allocation6 [shape = 's32[1]{0}', space=sflag, size = 0x4, scoped, tag = 'scoped memory for tpu_custom_call.1']
    #allocation7 [shape = 'u8[2048]{0}', space=vmem, size = 0x800, scoped, tag = 'output window, operand 0, single buffered']
    %7 = vsyncpa [#allocation3], 0
    %8 = vsyncpa [#allocation6], 0
    %9 = vsyncpa [#allocation4], 0
    // Predicated region
    $region2: #{tpu_custom_call.1} parent=1 // pred_check
      _
    $region3: #{tpu_custom_call.1} parent=1 // pred_check_branch
      %11 = sbr.rel (0) target = $region5
    $region4: #{tpu_custom_call.1} parent=1 // pred_region
      %s13 = ssub.s32 16, 16
      %14 = vsyncadd [#allocation3], %s13
      %s16 = sshll.u32 [#allocation2], 4
      %s17 = int_to_ptr.vmem [resolvable:$true] %s16
      %19 = dma.hbm_to_vmem [thread:$0]  %s0, 16, %s17, [#allocation3]
    $region5: #{tpu_custom_call.1} parent=1 // pred_fallthru
      _
    // Predicated region
    $region6: #{tpu_custom_call.1} parent=1 // pred_check
      _
    $region7: #{tpu_custom_call.1} parent=1 // pred_check_branch
      %21 = sbr.rel (0) target = $region9
    $region8: #{tpu_custom_call.1} parent=1 // pred_region
      %s23 = ssub.s32 512, 512
      %24 = vsyncadd [#allocation6], %s23
      %s25 = sshll.u32 [#allocation5], 4
      %s26 = int_to_ptr.vmem [resolvable:$true] %s25
      %31 = dma.hbm_to_vmem [thread:$0]  %s1, 512, %s26, [#allocation6], 128, 128, 8
    $region9: #{tpu_custom_call.1} parent=1 // pred_fallthru
      _
    // Predicated region
    $region10: #{tpu_custom_call.1} parent=1 // pred_check
      _
    $region11: #{tpu_custom_call.1} parent=1 // pred_check_branch
      %33 = sbr.rel (0) target = $region13
    $region12: #{tpu_custom_call.1} parent=1 // pred_region
      %34 = dma.done [#allocation3], 16
    $region13: #{tpu_custom_call.1} parent=1 // pred_fallthru
      _
    // Predicated region
    $region14: #{tpu_custom_call.1} parent=1 // pred_check
      _
    $region15: #{tpu_custom_call.1} parent=1 // pred_check_branch
      %36 = sbr.rel (0) target = $region17
    $region16: #{tpu_custom_call.1} parent=1 // pred_region
      %37 = dma.done [#allocation6], 512
    $region17: #{tpu_custom_call.1} parent=1 // pred_fallthru
      _
    %v38 = vld [vmem:[#allocation2] sm:$0x1]
    %v39 = vld [vmem:[#allocation5] sm:$0xff]
    %v41 = vlaneseq
    %v42 = vshrl.u32 %v41, 7
    %v43 = vsub.s32 0, %v42
    %v44 = vrot.slane %v38, %v43
    %47 = vset.pattern.permute.xlu0 0
    %48 = vperm.xlu0 %47, %v39
    %v49 = vpop.permute.xlu0 %48
    %v51 = vmul.f32 %v49, %v44
    %v52 = vtanh.pop %v51
    %s53 = scalar_lea.vmem [#allocation5], 8
    %v54 = vld [vmem:[%s53] sm:$0xff]
    %v55 = vlaneseq
    %v56 = vshrl.u32 %v55, 7
    %v57 = vsub.s32 0, %v56
    %v58 = vrot.slane %v52, %v57
    %60 = vset.pattern.permute.xlu0 0
    %61 = vperm.xlu0 %60, %v54
    %v62 = vpop.permute.xlu0 %61
    %v64 = vmul.f32 %v62, %v58
    %v65 = vlaneseq
    %v66 = vshrl.u32 %v65, 7
    %v67 = vsub.s32 1, %v66
    %v68 = vrot.slane %v52, %v67
    %69 = vset.pattern.permute.xlu0 1
    %70 = vperm.xlu0 %69, %v54
    %v71 = vpop.permute.xlu0 %70
    %v73 = vmul.f32 %v71, %v68
    %v74 = vadd.f32 %v64, %v73
    %v75 = vlaneseq
    %v76 = vshrl.u32 %v75, 7
    %v77 = vsub.s32 2, %v76
    %v78 = vrot.slane %v52, %v77
    %79 = vset.pattern.permute.xlu0 2
    %80 = vperm.xlu0 %79, %v54
    %v81 = vpop.permute.xlu0 %80
    %v83 = vmul.f32 %v81, %v78
    %v84 = vadd.f32 %v74, %v83
    %v85 = vlaneseq
    %v86 = vshrl.u32 %v85, 7
    %v87 = vsub.s32 3, %v86
    %v88 = vrot.slane %v52, %v87
    %89 = vset.pattern.permute.xlu0 3
    %90 = vperm.xlu0 %89, %v54
    %v91 = vpop.permute.xlu0 %90
    %v93 = vmul.f32 %v91, %v88
    %v94 = vadd.f32 %v84, %v93
    %v95 = vtanh.pop %v94
    %s96 = scalar_lea.vmem [#allocation5], 16
    %v97 = vld [vmem:[%s96] sm:$0xff]
    %v98 = vlaneseq
    %v99 = vshrl.u32 %v98, 7
    %v100 = vsub.s32 0, %v99
    %v101 = vrot.slane %v95, %v100
    %103 = vset.pattern.permute.xlu0 0
    %104 = vperm.xlu0 %103, %v97
    %v105 = vpop.permute.xlu0 %104
    %v107 = vmul.f32 %v105, %v101
    %v108 = vlaneseq
    %v109 = vshrl.u32 %v108, 7
    %v110 = vsub.s32 1, %v109
    %v111 = vrot.slane %v95, %v110
    %112 = vset.pattern.permute.xlu0 1
    %113 = vperm.xlu0 %112, %v97
    %v114 = vpop.permute.xlu0 %113
    %v116 = vmul.f32 %v114, %v111
    %v117 = vadd.f32 %v107, %v116
    %v118 = vlaneseq
    %v119 = vshrl.u32 %v118, 7
    %v120 = vsub.s32 2, %v119
    %v121 = vrot.slane %v95, %v120
    %122 = vset.pattern.permute.xlu0 2
    %123 = vperm.xlu0 %122, %v97
    %v124 = vpop.permute.xlu0 %123
    %v126 = vmul.f32 %v124, %v121
    %v127 = vadd.f32 %v117, %v126
    %v128 = vlaneseq
    %v129 = vshrl.u32 %v128, 7
    %v130 = vsub.s32 3, %v129
    %v131 = vrot.slane %v95, %v130
    %132 = vset.pattern.permute.xlu0 3
    %133 = vperm.xlu0 %132, %v97
    %v134 = vpop.permute.xlu0 %133
    %v136 = vmul.f32 %v134, %v131
    %v137 = vadd.f32 %v127, %v136
    %v138 = vtanh.pop %v137
    %s139 = scalar_lea.vmem [#allocation5], 24
    %v140 = vld [vmem:[%s139] sm:$0xff]
    %v141 = vlaneseq
    %v142 = vshrl.u32 %v141, 7
    %v143 = vsub.s32 0, %v142
    %v144 = vrot.slane %v138, %v143
    %146 = vset.pattern.permute.xlu0 0
    %147 = vperm.xlu0 %146, %v140
    %v148 = vpop.permute.xlu0 %147
    %v150 = vmul.f32 %v148, %v144
    %v151 = vlaneseq
    %v152 = vshrl.u32 %v151, 7
    %v153 = vsub.s32 1, %v152
    %v154 = vrot.slane %v138, %v153
    %155 = vset.pattern.permute.xlu0 1
    %156 = vperm.xlu0 %155, %v140
    %v157 = vpop.permute.xlu0 %156
    %v159 = vmul.f32 %v157, %v154
    %v160 = vadd.f32 %v150, %v159
    %v161 = vlaneseq
    %v162 = vshrl.u32 %v161, 7
    %v163 = vsub.s32 2, %v162
    %v164 = vrot.slane %v138, %v163
    %165 = vset.pattern.permute.xlu0 2
    %166 = vperm.xlu0 %165, %v140
    %v167 = vpop.permute.xlu0 %166
    %v169 = vmul.f32 %v167, %v164
    %v170 = vadd.f32 %v160, %v169
    %v171 = vlaneseq
    %v172 = vshrl.u32 %v171, 7
    %v173 = vsub.s32 3, %v172
    %v174 = vrot.slane %v138, %v173
    %175 = vset.pattern.permute.xlu0 3
    %176 = vperm.xlu0 %175, %v140
    %v177 = vpop.permute.xlu0 %176
    %v179 = vmul.f32 %v177, %v174
    %v180 = vadd.f32 %v170, %v179
    %181 = vst [vmem:[#allocation7] sm:$0xf] %v180
    // Predicated region
    $region18: #{tpu_custom_call.1} parent=1 // pred_check
      _
    $region19: #{tpu_custom_call.1} parent=1 // pred_check_branch
      %183 = sbr.rel (0) target = $region21
    $region20: #{tpu_custom_call.1} parent=1 // pred_region
      %s185 = ssub.s32 64, 64
      %186 = vsyncadd [#allocation4], %s185
      %s188 = sshll.u32 [#allocation7], 4
      %s189 = int_to_ptr.vmem [resolvable:$true] %s188
      %191 = dma.vmem_to_hbm [thread:$0]  %s189, 64, %s2, [#allocation4]
    $region21: #{tpu_custom_call.1} parent=1 // pred_fallthru
      _
    // Predicated region
    $region22: #{tpu_custom_call.1} parent=1 // pred_check
      _
    $region23: #{tpu_custom_call.1} parent=1 // pred_check_branch
      %193 = sbr.rel (0) target = $region25
    $region24: #{tpu_custom_call.1} parent=1 // pred_region
      %194 = dma.done [#allocation4], 64
    $region25: #{tpu_custom_call.1} parent=1 // pred_fallthru
      _
    %195 = vsyncpa [#allocation3], 1
    %196 = vsyncpa [#allocation6], 1
    %197 = vsyncpa [#allocation4], 1

</llo_original>
